<compile_context>
chip_gen: v5e
topology: v5e:2x2
jax: 0.10.0
libtpu: 0.0.40
codegen_flags: <defaults>
</compile_context>

<pallas_src>
import jax
import jax.numpy as jnp
from jax.experimental import pallas as pl
from jax.experimental.pallas import tpu as pltpu

SUBLANE = 8


def _cdiv(a, b):
    return (a + b - 1) // b


def _round_up(x, m):
    return ((x + m - 1) // m) * m


def _pick_tile_b(batch, max_tile=1024):
    # >= 2 grid steps when the batch allows it (v7x has 2 TensorCores),
    # sublane-aligned, capped so double-buffered tiles stay small in VMEM.
    tb = _round_up(_cdiv(batch, 2), SUBLANE)
    return max(SUBLANE, min(tb, max_tile))


def generator_kernel(z_ref, w1_ref, b1_ref, alpha_ref, w2_ref, b2_ref, out_ref):
    # l1: (tb, out_dim) @ (out_dim, num_hidden), f32 accumulate on the MXU.
    x = z_ref[...].astype(w1_ref.dtype)
    h1 = jnp.dot(x, w1_ref[...], preferred_element_type=jnp.float32)
    h1 = h1 + b1_ref[...]
    # PReLU with per-channel slope (f32 on the VPU).
    h1 = jnp.where(h1 >= 0, h1, alpha_ref[...] * h1)
    # l2: (tb, num_hidden) @ (num_hidden, in_dim), f32 accumulate.
    h2 = jnp.dot(h1.astype(w2_ref.dtype), w2_ref[...],
                 preferred_element_type=jnp.float32)
    out_ref[...] = (h2 + b2_ref[...]).astype(out_ref.dtype)


def prepare_params(w1, b1, alpha, w2, b2, *, matmul_dtype=jnp.float32):
    """One-time parameter prep (transpose + cast).  Call once at init, not per
    forward.  Inputs are in PyTorch layout:
      w1: (num_hidden, out_dim), b1: (num_hidden,), alpha: (num_hidden,),
      w2: (in_dim, num_hidden),  b2: (in_dim,)"""
    w1_t = jnp.asarray(w1).T.astype(matmul_dtype)            # (out_dim, num_hidden)
    b1_r = jnp.asarray(b1).reshape(1, -1).astype(jnp.float32)  # (1, num_hidden)
    a_r = jnp.asarray(alpha).reshape(1, -1).astype(jnp.float32)  # (1, num_hidden)
    w2_t = jnp.asarray(w2).T.astype(matmul_dtype)            # (num_hidden, in_dim)
    b2_r = jnp.asarray(b2).reshape(1, -1).astype(jnp.float32)  # (1, in_dim)
    return w1_t, b1_r, a_r, w2_t, b2_r


def generator_forward(z, params, *, max_tile_b=1024):
    """z: (B, out_dim) -> (B, in_dim)."""
    w1_t, b1, alpha, w2_t, b2 = params
    B, out_dim = z.shape
    num_hidden = w1_t.shape[1]
    in_dim = w2_t.shape[1]

    tb = _pick_tile_b(B, max_tile_b)
    grid = (_cdiv(B, tb),)

    z_bytes = B * out_dim * jnp.dtype(z.dtype).itemsize
    out_bytes = B * in_dim * 4
    param_bytes = sum(int(p.size) * jnp.dtype(p.dtype).itemsize
                      for p in (w1_t, b1, alpha, w2_t, b2))
    cost = pl.CostEstimate(
        flops=2 * B * (out_dim * num_hidden + num_hidden * in_dim),
        transcendentals=0,
        bytes_accessed=z_bytes + out_bytes + param_bytes,
    )

    return pl.pallas_call(
        generator_kernel,
        out_shape=jax.ShapeDtypeStruct((B, in_dim), jnp.float32),
        grid=grid,
        in_specs=[
            # Streamed per grid step (natural feature dims, no padding).
            pl.BlockSpec((tb, out_dim), lambda i: (i, 0)),
            # Weight-stationary residents: same block every step (no re-DMA).
            pl.BlockSpec((out_dim, num_hidden), lambda i: (0, 0)),
            pl.BlockSpec((1, num_hidden), lambda i: (0, 0)),
            pl.BlockSpec((1, num_hidden), lambda i: (0, 0)),
            pl.BlockSpec((num_hidden, in_dim), lambda i: (0, 0)),
            pl.BlockSpec((1, in_dim), lambda i: (0, 0)),
        ],
        out_specs=pl.BlockSpec((tb, in_dim), lambda i: (i, 0)),
        compiler_params=pltpu.CompilerParams(
            dimension_semantics=("parallel",)),
        cost_estimate=cost,
    )(z, w1_t, b1, alpha, w2_t, b2)


def reference_forward(z, w1, b1, alpha, w2, b2):
    h1 = z @ w1.T + b1
    h1 = jnp.where(h1 >= 0, h1, alpha * h1)
    return h1 @ w2.T + b2


if __name__ == "__main__":
    # hidden_dims = (in_dim, num_hidden, out_dim)
    in_dim, num_hidden, out_dim = 32, 64, 16
    batch = 24  # -> tile_b=16, grid=(2,): exercises the 2-step parallel grid
                #    and the masked partial last block (24 % 16 != 0).

    key = jax.random.PRNGKey(0)
    k_z, k_w1, k_b1, k_w2, k_b2 = jax.random.split(key, 5)

    z = jax.random.normal(k_z, (batch, out_dim), dtype=jnp.float32)

    # PyTorch-layout parameters with nn.Linear-style init scales.
    s1 = out_dim ** -0.5
    w1 = jax.random.uniform(k_w1, (num_hidden, out_dim), jnp.float32, -s1, s1)
    b1 = jax.random.uniform(k_b1, (num_hidden,), jnp.float32, -s1, s1)
    alpha = jnp.full((num_hidden,), 0.25, dtype=jnp.float32)  # nn.PReLU(num_hidden)
    s2 = num_hidden ** -0.5
    w2 = jax.random.uniform(k_w2, (in_dim, num_hidden), jnp.float32, -s2, s2)
    b2 = jax.random.uniform(k_b2, (in_dim,), jnp.float32, -s2, s2)

    ref = reference_forward(z, w1, b1, alpha, w2, b2)

    # f32 MXU-operand path: bit-accurate enough for a tight tolerance.
    params_f32 = prepare_params(w1, b1, alpha, w2, b2, matmul_dtype=jnp.float32)
    out = jax.block_until_ready(generator_forward(z, params_f32))
    assert out.shape == (batch, in_dim)
    assert jnp.allclose(out, ref, atol=1e-5, rtol=1e-5), "f32 path mismatch"

    # bf16 MXU-operand path (perf option from the review): looser tolerance.
    params_bf16 = prepare_params(w1, b1, alpha, w2, b2, matmul_dtype=jnp.bfloat16)
    out_bf16 = jax.block_until_ready(generator_forward(z, params_bf16))
    assert out_bf16.shape == (batch, in_dim)
    assert jnp.allclose(out_bf16, ref, atol=5e-2, rtol=5e-2), "bf16 path mismatch"

    print("KERNEL_OK")
</pallas_src>

<mosaic_0001>
module attributes {stable_mosaic.version = 11 : i64} {
  func.func @generator_kernel(%arg0: i32, %arg1: memref<16x16xf32, #tpu.memory_space<vmem>>, %arg2: memref<16x64xf32, #tpu.memory_space<vmem>>, %arg3: memref<1x64xf32, #tpu.memory_space<vmem>>, %arg4: memref<1x64xf32, #tpu.memory_space<vmem>>, %arg5: memref<64x32xf32, #tpu.memory_space<vmem>>, %arg6: memref<1x32xf32, #tpu.memory_space<vmem>>, %arg7: memref<16x32xf32, #tpu.memory_space<vmem>>) attributes {dimension_semantics = [#tpu.dimension_semantics<parallel>], iteration_bounds = array<i64: 2>, scalar_prefetch = 0 : i64, scratch_operands = 0 : i64, tpu.core_type = #tpu.core_type<tc>, window_params = [{transform_indices = @transform_0, window_bounds = array<i64: 16, 16>}, {pipeline_mode = #tpu.pipeline_mode<synchronous>, transform_indices = @transform_1, window_bounds = array<i64: 16, 64>}, {pipeline_mode = #tpu.pipeline_mode<synchronous>, transform_indices = @transform_2, window_bounds = array<i64: 1, 64>}, {pipeline_mode = #tpu.pipeline_mode<synchronous>, transform_indices = @transform_3, window_bounds = array<i64: 1, 64>}, {pipeline_mode = #tpu.pipeline_mode<synchronous>, transform_indices = @transform_4, window_bounds = array<i64: 64, 32>}, {pipeline_mode = #tpu.pipeline_mode<synchronous>, transform_indices = @transform_5, window_bounds = array<i64: 1, 32>}, {transform_indices = @transform_6, window_bounds = array<i64: 16, 32>}]} {
    %c0 = arith.constant 0 : index
    %c0_0 = arith.constant 0 : index
    %0 = vector.load %arg1[%c0, %c0_0] : memref<16x16xf32, #tpu.memory_space<vmem>>, vector<16x16xf32>
    %c0_1 = arith.constant 0 : index
    %c0_2 = arith.constant 0 : index
    %1 = vector.load %arg2[%c0_1, %c0_2] : memref<16x64xf32, #tpu.memory_space<vmem>>, vector<16x64xf32>
    %cst = arith.constant dense<0.000000e+00> : vector<16x64xf32>
    %2 = tpu.matmul %0, %1, %cst {dimension_numbers = #tpu.dot_dimension_numbers<[1], [0], [0], [1], [0, 0, 1, 1], [], []>} : vector<16x16xf32>, vector<16x64xf32>, vector<16x64xf32> -> vector<16x64xf32>
    %c0_3 = arith.constant 0 : index
    %c0_4 = arith.constant 0 : index
    %3 = vector.load %arg3[%c0_3, %c0_4] : memref<1x64xf32, #tpu.memory_space<vmem>>, vector<1x64xf32>
    %4 = vector.broadcast %3 : vector<1x64xf32> to vector<16x64xf32>
    %5 = arith.addf %2, %4 : vector<16x64xf32>
    %cst_5 = arith.constant 0.000000e+00 : f32
    %6 = vector.broadcast %cst_5 : f32 to vector<16x64xf32>
    %7 = arith.cmpf oge, %5, %6 : vector<16x64xf32>
    %c0_6 = arith.constant 0 : index
    %c0_7 = arith.constant 0 : index
    %8 = vector.load %arg4[%c0_6, %c0_7] : memref<1x64xf32, #tpu.memory_space<vmem>>, vector<1x64xf32>
    %9 = vector.broadcast %8 : vector<1x64xf32> to vector<16x64xf32>
    %10 = arith.mulf %9, %5 : vector<16x64xf32>
    %11 = arith.select %7, %5, %10 : vector<16x64xi1>, vector<16x64xf32>
    %c0_8 = arith.constant 0 : index
    %c0_9 = arith.constant 0 : index
    %12 = vector.load %arg5[%c0_8, %c0_9] : memref<64x32xf32, #tpu.memory_space<vmem>>, vector<64x32xf32>
    %cst_10 = arith.constant dense<0.000000e+00> : vector<16x32xf32>
    %13 = tpu.matmul %11, %12, %cst_10 {dimension_numbers = #tpu.dot_dimension_numbers<[1], [0], [0], [1], [0, 0, 1, 1], [], []>} : vector<16x64xf32>, vector<64x32xf32>, vector<16x32xf32> -> vector<16x32xf32>
    %c0_11 = arith.constant 0 : index
    %c0_12 = arith.constant 0 : index
    %14 = vector.load %arg6[%c0_11, %c0_12] : memref<1x32xf32, #tpu.memory_space<vmem>>, vector<1x32xf32>
    %15 = vector.broadcast %14 : vector<1x32xf32> to vector<16x32xf32>
    %16 = arith.addf %13, %15 : vector<16x32xf32>
    %c0_13 = arith.constant 0 : index
    %c0_14 = arith.constant 0 : index
    %17 = vector.load %arg7[%c0_13, %c0_14] : memref<16x32xf32, #tpu.memory_space<vmem>>, vector<16x32xf32>
    tpu.vector_store %arg7[%c0_13, %c0_14], %16 {strides = array<i32>} : memref<16x32xf32, #tpu.memory_space<vmem>>, vector<16x32xf32>,
    return
  }
  func.func @transform_0(%arg0: i32) -> (i32, i32) {
    %c0_i32 = arith.constant 0 : i32
    %c0_i32_0 = arith.constant 0 : i32
    return %arg0, %c0_i32 : i32, i32
  }
  func.func @transform_1(%arg0: i32) -> (i32, i32) {
    %c0_i32 = arith.constant 0 : i32
    %c0_i32_0 = arith.constant 0 : i32
    %c0_i32_1 = arith.constant 0 : i32
    return %c0_i32, %c0_i32_0 : i32, i32
  }
  func.func @transform_2(%arg0: i32) -> (i32, i32) {
    %c0_i32 = arith.constant 0 : i32
    %c0_i32_0 = arith.constant 0 : i32
    %c0_i32_1 = arith.constant 0 : i32
    return %c0_i32, %c0_i32_0 : i32, i32
  }
  func.func @transform_3(%arg0: i32) -> (i32, i32) {
    %c0_i32 = arith.constant 0 : i32
    %c0_i32_0 = arith.constant 0 : i32
    %c0_i32_1 = arith.constant 0 : i32
    return %c0_i32, %c0_i32_0 : i32, i32
  }
  func.func @transform_4(%arg0: i32) -> (i32, i32) {
    %c0_i32 = arith.constant 0 : i32
    %c0_i32_0 = arith.constant 0 : i32
    %c0_i32_1 = arith.constant 0 : i32
    return %c0_i32, %c0_i32_0 : i32, i32
  }
  func.func @transform_5(%arg0: i32) -> (i32, i32) {
    %c0_i32 = arith.constant 0 : i32
    %c0_i32_0 = arith.constant 0 : i32
    %c0_i32_1 = arith.constant 0 : i32
    return %c0_i32, %c0_i32_0 : i32, i32
  }
  func.func @transform_6(%arg0: i32) -> (i32, i32) {
    %c0_i32 = arith.constant 0 : i32
    %c0_i32_0 = arith.constant 0 : i32
    return %arg0, %c0_i32 : i32, i32
  }
}

</mosaic_0001>

<llo_original>
// kernel: tpu_custom_call.1
$region0: #{tpu_custom_call.1}
  #allocation0 [shape = 'u32[]', space=smem, size = 0x4, offset = 0x4, fixed_abs, tag = 'smem constant byte address 0x4 - core index']
  #allocation1 [shape = 'u32[72,128]{1,0:T(1,128)}', space=vmem, size = 0x9000, scoped, tag = 'internal scratch']
  %s0 = inlined_call_operand.vmem [shape: f32[24,16], index: 0, kind: input, shape index: {}]
  %s1 = inlined_call_operand.vmem [shape: f32[16,64], index: 1, kind: input, shape index: {}]
  %s2 = inlined_call_operand.vmem [shape: f32[1,64], index: 2, kind: input, shape index: {}]
  %s3 = inlined_call_operand.vmem [shape: f32[1,64], index: 3, kind: input, shape index: {}]
  %s4 = inlined_call_operand.vmem [shape: f32[64,32], index: 4, kind: input, shape index: {}]
  %s5 = inlined_call_operand.vmem [shape: f32[1,32], index: 5, kind: input, shape index: {}]
  %s6 = inlined_call_operand.hbm [shape: f32[24,32], index: 6, kind: output, shape index: {}]
  %s7 = sld [smem:[#allocation0]]
  $region57: #{tpu_custom_call.1} parent=0
    _
  %s9 = ssub.s32 1, %s7
  %s10 = scalar_select 0, %s9, %s7
  $region1: #{tpu_custom_call.1} parent=0
    #allocation2 [shape = 'u8[16384]{0}', space=vmem, size = 0x4000, scoped, tag = 'output window, operand 0']
    #allocation3 [shape = 's32[2]{0}', space=sflag, size = 0x8, scoped, tag = 'scoped memory for tpu_custom_call.1']
    %11 = vsyncpa [#allocation3], 0
    %s12 = scalar_lea.sflag [#allocation3], 1
    %13 = vsyncpa %s12, 0
    loop: start=0, step=1, limit=4
    $region2: #{tpu_custom_call.1} parent=1 // loop_pre_header
      _
    $region3: #{tpu_custom_call.1} parent=1 // loop_header
      %s15 = sphi 0, %s19
      %p16 = scmp.ge.s32.totalorder %s15, 4
      %s25 = sphi 0, %s27
      %s28 = sphi 0, %s25
      %s29 = sphi 0, %s28
      %s45 = sphi 0, %s29
      %s49 = sphi 0, %s49
      %s51 = sphi 0, %s49
      %s52 = sphi 0, %s51
      %s66 = sphi 0, %s52
      %s70 = sphi 0, %s70
      %s72 = sphi 0, %s70
      %s73 = sphi 0, %s72
      %s87 = sphi 0, %s73
      %s91 = sphi 0, %s91
      %s93 = sphi 0, %s91
      %s94 = sphi 0, %s93
      %s108 = sphi 0, %s94
      %s112 = sphi 0, %s112
      %s114 = sphi 0, %s112
      %s115 = sphi 0, %s114
      %s129 = sphi 0, %s115
      %s133 = sphi 0, %s133
      %s135 = sphi 0, %s133
      %s136 = sphi 0, %s135
      %s150 = sphi 0, %s136
      %s156 = sphi 0, %s158
      %s159 = sphi 0, %s156
      %s160 = sphi 0, %s159
      %s176 = sphi 0, %s160
    $region4: #{tpu_custom_call.1} parent=1 // loop_header_branch
      %18 = sbr.rel (%p16) target = $region8
    $region5: #{tpu_custom_call.1} parent=1 // loop_body
      %s20 = ssub.s32 %s15, 1
      %s21 = ssub.s32 %s15, 2
      %s22 = sadd.s32 %s15, 1
      %s23 = ssub.s32 %s15, %s22
      %p24 = scmp.eq.s32.totalorder %s23, 0
      %s26 = sadd.s32 %s25, 1
      %s27 = scalar_select %p24, %s25, %s26
      %p30 = pneg %p24
      %p31 = scmp.eq.s32.totalorder %s15, 1
      %p32 = por %p30, %p31
      %p33 = scmp.ne.s32.totalorder %s25, %s28
      %p34 = scmp.eq.s32.totalorder %s15, 0
      %p35 = por %p33, %p34
      %p36 = scmp.ne.s32.totalorder %s25, %s28
      %p37 = scmp.eq.s32.totalorder %s20, 1
      %p38 = por %p36, %p37
      %p39 = scmp.ne.s32.totalorder %s28, %s29
      %p40 = scmp.eq.s32.totalorder %s20, 0
      %p41 = por %p39, %p40
      %p42 = scmp.ne.s32.totalorder %s28, %s29
      %p43 = scmp.eq.s32.totalorder %s21, 1
      %p44 = por %p42, %p43
      %p46 = scmp.ne.s32.totalorder %s29, %s45
      %p47 = scmp.eq.s32.totalorder %s21, 0
      %p48 = por %p46, %p47
      %s50 = sadd.s32 %s49, 1
      %p53 = scmp.eq.s32.totalorder %s15, 1
      %p54 = scmp.ne.s32.totalorder %s49, %s51
      %p55 = scmp.eq.s32.totalorder %s15, 0
      %p56 = por %p54, %p55
      %p57 = scmp.ne.s32.totalorder %s49, %s51
      %p58 = scmp.eq.s32.totalorder %s20, 1
      %p59 = por %p57, %p58
      %p60 = scmp.ne.s32.totalorder %s51, %s52
      %p61 = scmp.eq.s32.totalorder %s20, 0
      %p62 = por %p60, %p61
      %p63 = scmp.ne.s32.totalorder %s51, %s52
      %p64 = scmp.eq.s32.totalorder %s21, 1
      %p65 = por %p63, %p64
      %p67 = scmp.ne.s32.totalorder %s52, %s66
      %p68 = scmp.eq.s32.totalorder %s21, 0
      %p69 = por %p67, %p68
      %s71 = sadd.s32 %s70, 1
      %p74 = scmp.eq.s32.totalorder %s15, 1
      %p75 = scmp.ne.s32.totalorder %s70, %s72
      %p76 = scmp.eq.s32.totalorder %s15, 0
      %p77 = por %p75, %p76
      %p78 = scmp.ne.s32.totalorder %s70, %s72
      %p79 = scmp.eq.s32.totalorder %s20, 1
      %p80 = por %p78, %p79
      %p81 = scmp.ne.s32.totalorder %s72, %s73
      %p82 = scmp.eq.s32.totalorder %s20, 0
      %p83 = por %p81, %p82
      %p84 = scmp.ne.s32.totalorder %s72, %s73
      %p85 = scmp.eq.s32.totalorder %s21, 1
      %p86 = por %p84, %p85
      %p88 = scmp.ne.s32.totalorder %s73, %s87
      %p89 = scmp.eq.s32.totalorder %s21, 0
      %p90 = por %p88, %p89
      %s92 = sadd.s32 %s91, 1
      %p95 = scmp.eq.s32.totalorder %s15, 1
      %p96 = scmp.ne.s32.totalorder %s91, %s93
      %p97 = scmp.eq.s32.totalorder %s15, 0
      %p98 = por %p96, %p97
      %p99 = scmp.ne.s32.totalorder %s91, %s93
      %p100 = scmp.eq.s32.totalorder %s20, 1
      %p101 = por %p99, %p100
      %p102 = scmp.ne.s32.totalorder %s93, %s94
      %p103 = scmp.eq.s32.totalorder %s20, 0
      %p104 = por %p102, %p103
      %p105 = scmp.ne.s32.totalorder %s93, %s94
      %p106 = scmp.eq.s32.totalorder %s21, 1
      %p107 = por %p105, %p106
      %p109 = scmp.ne.s32.totalorder %s94, %s108
      %p110 = scmp.eq.s32.totalorder %s21, 0
      %p111 = por %p109, %p110
      %s113 = sadd.s32 %s112, 1
      %p116 = scmp.eq.s32.totalorder %s15, 1
      %p117 = scmp.ne.s32.totalorder %s112, %s114
      %p118 = scmp.eq.s32.totalorder %s15, 0
      %p119 = por %p117, %p118
      %p120 = scmp.ne.s32.totalorder %s112, %s114
      %p121 = scmp.eq.s32.totalorder %s20, 1
      %p122 = por %p120, %p121
      %p123 = scmp.ne.s32.totalorder %s114, %s115
      %p124 = scmp.eq.s32.totalorder %s20, 0
      %p125 = por %p123, %p124
      %p126 = scmp.ne.s32.totalorder %s114, %s115
      %p127 = scmp.eq.s32.totalorder %s21, 1
      %p128 = por %p126, %p127
      %p130 = scmp.ne.s32.totalorder %s115, %s129
      %p131 = scmp.eq.s32.totalorder %s21, 0
      %p132 = por %p130, %p131
      %s134 = sadd.s32 %s133, 1
      %p137 = scmp.eq.s32.totalorder %s15, 1
      %p138 = scmp.ne.s32.totalorder %s133, %s135
      %p139 = scmp.eq.s32.totalorder %s15, 0
      %p140 = por %p138, %p139
      %p141 = scmp.ne.s32.totalorder %s133, %s135
      %p142 = scmp.eq.s32.totalorder %s20, 1
      %p143 = por %p141, %p142
      %p144 = scmp.ne.s32.totalorder %s135, %s136
      %p145 = scmp.eq.s32.totalorder %s20, 0
      %p146 = por %p144, %p145
      %p147 = scmp.ne.s32.totalorder %s135, %s136
      %p148 = scmp.eq.s32.totalorder %s21, 1
      %p149 = por %p147, %p148
      %p151 = scmp.ne.s32.totalorder %s136, %s150
      %p152 = scmp.eq.s32.totalorder %s21, 0
      %p153 = por %p151, %p152
      %s154 = ssub.s32 %s15, %s22
      %p155 = scmp.eq.s32.totalorder %s154, 0
      %s157 = sadd.s32 %s156, 1
      %s158 = scalar_select %p155, %s156, %s157
      %p161 = pneg %p155
      %p162 = scmp.eq.s32.totalorder %s15, 1
      %p163 = por %p161, %p162
      %p164 = scmp.ne.s32.totalorder %s156, %s159
      %p165 = scmp.eq.s32.totalorder %s15, 0
      %p166 = por %p164, %p165
      %p167 = scmp.ne.s32.totalorder %s156, %s159
      %p168 = scmp.eq.s32.totalorder %s20, 1
      %p169 = por %p167, %p168
      %p170 = scmp.ne.s32.totalorder %s159, %s160
      %p171 = scmp.eq.s32.totalorder %s20, 0
      %p172 = por %p170, %p171
      %p173 = scmp.ne.s32.totalorder %s159, %s160
      %p174 = scmp.eq.s32.totalorder %s21, 1
      %p175 = por %p173, %p174
      %p177 = scmp.ne.s32.totalorder %s160, %s176
      %p178 = scmp.eq.s32.totalorder %s21, 0
      %p179 = por %p177, %p178
      %p180 = scmp.le.s32.totalorder 1, %s15
      %p181 = scmp.lt.s32.totalorder %s15, 3
      %p182 = pnand %p180, %p181
      %p183 = pneg %p182
      // Predicated region
      $region9: #{tpu_custom_call.1} parent=5 // pred_check
        _
      $region10: #{tpu_custom_call.1} parent=5 // pred_check_branch
        %185 = sbr.rel (%p182) target = $region12
      $region11: #{tpu_custom_call.1} parent=5 // pred_region
        %s186 = ssub.s32 %s15, 1
        // Predicated region
        $region13: #{tpu_custom_call.1} parent=11 // pred_check
          %p187 = pneg %p62
        $region14: #{tpu_custom_call.1} parent=11 // pred_check_branch
          %189 = sbr.rel (%p187) target = $region16
        $region15: #{tpu_custom_call.1} parent=11 // pred_region
          _
        $region16: #{tpu_custom_call.1} parent=11 // pred_fallthru
          _
        // Predicated region
        $region17: #{tpu_custom_call.1} parent=11 // pred_check
          %p190 = pneg %p83
        $region18: #{tpu_custom_call.1} parent=11 // pred_check_branch
          %192 = sbr.rel (%p190) target = $region20
        $region19: #{tpu_custom_call.1} parent=11 // pred_region
          _
        $region20: #{tpu_custom_call.1} parent=11 // pred_fallthru
          _
        // Predicated region
        $region21: #{tpu_custom_call.1} parent=11 // pred_check
          %p193 = pneg %p104
        $region22: #{tpu_custom_call.1} parent=11 // pred_check_branch
          %195 = sbr.rel (%p193) target = $region24
        $region23: #{tpu_custom_call.1} parent=11 // pred_region
          _
        $region24: #{tpu_custom_call.1} parent=11 // pred_fallthru
          _
        // Predicated region
        $region25: #{tpu_custom_call.1} parent=11 // pred_check
          %p196 = pneg %p125
        $region26: #{tpu_custom_call.1} parent=11 // pred_check_branch
          %198 = sbr.rel (%p196) target = $region28
        $region27: #{tpu_custom_call.1} parent=11 // pred_region
          _
        $region28: #{tpu_custom_call.1} parent=11 // pred_fallthru
          _
        // Predicated region
        $region29: #{tpu_custom_call.1} parent=11 // pred_check
          %p199 = pneg %p146
        $region30: #{tpu_custom_call.1} parent=11 // pred_check_branch
          %201 = sbr.rel (%p199) target = $region32
        $region31: #{tpu_custom_call.1} parent=11 // pred_region
          _
        $region32: #{tpu_custom_call.1} parent=11 // pred_fallthru
          _
      $region12: #{tpu_custom_call.1} parent=5 // pred_fallthru
        _
      %p202 = scmp.lt.s32.totalorder %s15, 2
      // Predicated region
      $region33: #{tpu_custom_call.1} parent=5 // pred_check
        %p203 = pneg %p202
      $region34: #{tpu_custom_call.1} parent=5 // pred_check_branch
        %205 = sbr.rel (%p203) target = $region36
      $region35: #{tpu_custom_call.1} parent=5 // pred_region
        // Predicated region
        $region37: #{tpu_custom_call.1} parent=35 // pred_check
          %p206 = pneg %p35
        $region38: #{tpu_custom_call.1} parent=35 // pred_check_branch
          %208 = sbr.rel (%p206) target = $region40
        $region39: #{tpu_custom_call.1} parent=35 // pred_region
          %s209 = smul.u32 2, %s15
          %s210 = ssub.s32 3, %s209
          %p211 = scmp.lt.s32.totalorder %s210, 2
          %s212 = scalar_select %p211, %s210, 2
          %s213 = smul.u32 8, %s212
          %p214 = scmp.lt.s32.totalorder %s209, 2
          %s215 = scalar_select %p214, %s209, 2
          %s216 = smul.addr %s215, 8
          %s217 = scalar_lea.vmem %s0, %s216
          %s218 = smul.u32 2, %s15
          %s219 = ssub.s32 3, %s218
          %p220 = scmp.lt.s32.totalorder %s219, 2
          %s221 = scalar_select %p220, %s219, 2
          %s222 = smul.u32 8, %s221
        $region40: #{tpu_custom_call.1} parent=35 // pred_fallthru
          _
      $region36: #{tpu_custom_call.1} parent=5 // pred_fallthru
        _
      %p223 = scmp.le.s32.totalorder 1, %s15
      %p224 = scmp.lt.s32.totalorder %s15, 3
      %p225 = pnand %p223, %p224
      %p226 = pneg %p225
      // Predicated region
      $region41: #{tpu_custom_call.1} parent=5 // pred_check
        _
      $region42: #{tpu_custom_call.1} parent=5 // pred_check_branch
        %228 = sbr.rel (%p225) target = $region44
      $region43: #{tpu_custom_call.1} parent=5 // pred_region
        %s229 = ssub.s32 %s15, 1
        %s230 = smul.u32 2, %s20
        %s231 = ssub.s32 3, %s230
        %p232 = scmp.lt.s32.totalorder %s231, 2
        %s233 = scalar_select %p232, %s231, 2
        %s234 = smul.u32 8, %s233
        %p235 = scmp.lt.s32.totalorder %s230, 2
        %s236 = scalar_select %p235, %s230, 2
        %s237 = smul.addr %s236, 8
        %s238 = scalar_lea.vmem %s0, %s237
        %p239 = pneg %p41
        %p240 = pneg %p38
        %p241 = pneg %p62
        %p242 = pneg %p59
        %p243 = pneg %p83
        %p244 = pneg %p80
        %p245 = pneg %p104
        %p246 = pneg %p101
        %p247 = pneg %p125
        %p248 = pneg %p122
        %p249 = pneg %p146
        %p250 = pneg %p143
        %p251 = pneg %p172
        %p252 = pneg %p169
        %s253 = sand.u32 %s159, 1
        %s254 = scalar_lea.sflag [#allocation3], %s253
        %s255 = sand.u32 %s159, 1
        %s256 = smul.addr %s255, 16
        %s257 = scalar_lea.vmem [#allocation2], %s256
        %s258 = smul.u32 2, %s20
        %s259 = ssub.s32 3, %s258
        %p260 = scmp.lt.s32.totalorder %s259, 2
        %s261 = scalar_select %p260, %s259, 2
        %s262 = smul.u32 8, %s261
        %p263 = scmp.lt.s32.totalorder %s258, 2
        %s264 = scalar_select %p263, %s258, 2
        %s265 = smul.addr %s264, 8
        %s266 = scalar_lea.vmem %s0, %s265
        %s267 = smul.u32 2, %s20
        %s268 = ssub.s32 3, %s267
        %p269 = scmp.lt.s32.totalorder %s268, 2
        %s270 = scalar_select %p269, %s268, 2
        %s271 = smul.u32 8, %s270
        %s272 = smul.u32 2, %s20
        %s273 = ssub.s32 3, %s272
        %p274 = scmp.lt.s32.totalorder %s273, 2
        %s275 = scalar_select %p274, %s273, 2
        %s276 = smul.u32 8, %s275
        %v277 = vld [vmem:[%s266] sm:$0xff]
        %v278 = vld [vmem:[%s266 + $0x8] sm:$0xff]
        %v279 = vld [vmem:[%s1] sm:$0xff]
        %v280 = vld [vmem:[%s1 + $0x8] sm:$0xff]
        %v281 = vld [vmem:[%s2] sm:$0x1]
        %v283 = vperm.slane %v281, 0
        %vm285 = vcmask 130048
        %v287 = vsel %vm285, %v277, 0
        %v290 = vsel %vm285, %v278, 0
        %292 = vmatpush.msra.mxu0 0.0
        %293 = vmatpush.msra.mxu0 0.0
        %294 = vmatpush.msra.mxu0 0.0
        %295 = vmatpush.msra.mxu0 0.0
        %296 = vmatpush.msra.mxu0 0.0
        %297 = vmatpush.msra.mxu0 0.0
        %298 = vmatpush.msra.mxu0 0.0
        %299 = vmatpush.msra.mxu0 0.0
        %300 = vmatpush.msra.mxu0 0.0
        %301 = vmatpush.msra.mxu0 0.0
        %302 = vmatpush.msra.mxu0 0.0
        %303 = vmatpush.msra.mxu0 0.0
        %304 = vmatpush.msra.mxu0 0.0
        %305 = vmatpush.msra.mxu0 0.0
        %306 = vmatpush.msra.mxu0 %v280
        %307 = vmatpush.msra.mxu0 %v279
        %308 = vmatmul.f32.gmra.mxu0 %v287
        %v309 = vpop.f32.mrf.mxu0
        %v310 = vadd.f32 %v283, %v309
        %311 = vmatmul.f32.gmra.mxu0 %v290
        %v312 = vpop.f32.mrf.mxu0
        %v313 = vadd.f32 %v283, %v312
        %314 = vdwg.mxu0
        %vm315 = vcmp.ge.f32.partialorder %v310, 0.0
        %vm316 = vcmp.ge.f32.partialorder %v313, 0.0
        %v317 = vld [vmem:[%s3] sm:$0x1]
        %v319 = vperm.slane %v317, 0
        %v321 = vmul.f32 %v319, %v310
        %v322 = vmul.f32 %v319, %v313
        %v323 = vsel %vm315, %v310, %v321
        %v324 = vsel %vm316, %v313, %v322
        %v325 = vld [vmem:[%s4] sm:$0xff]
        %v326 = vld [vmem:[%s4 + $0x8] sm:$0xff]
        %v327 = vld [vmem:[%s4 + $0x10] sm:$0xff]
        %v328 = vld [vmem:[%s4 + $0x18] sm:$0xff]
        %v329 = vld [vmem:[%s4 + $0x20] sm:$0xff]
        %v330 = vld [vmem:[%s4 + $0x28] sm:$0xff]
        %v331 = vld [vmem:[%s4 + $0x30] sm:$0xff]
        %v332 = vld [vmem:[%s4 + $0x38] sm:$0xff]
        %v333 = vld [vmem:[%s5] sm:$0x1]
        %v335 = vperm.slane %v333, 0
        %vm337 = vcmask 523264
        %v339 = vsel %vm337, %v323, 0
        %v342 = vsel %vm337, %v324, 0
        %344 = vmatpush.msra.mxu0 0.0
        %345 = vmatpush.msra.mxu0 0.0
        %346 = vmatpush.msra.mxu0 0.0
        %347 = vmatpush.msra.mxu0 0.0
        %348 = vmatpush.msra.mxu0 0.0
        %349 = vmatpush.msra.mxu0 0.0
        %350 = vmatpush.msra.mxu0 0.0
        %351 = vmatpush.msra.mxu0 0.0
        %352 = vmatpush.msra.mxu0 %v332
        %353 = vmatpush.msra.mxu0 %v331
        %354 = vmatpush.msra.mxu0 %v330
        %355 = vmatpush.msra.mxu0 %v329
        %356 = vmatpush.msra.mxu0 %v328
        %357 = vmatpush.msra.mxu0 %v327
        %358 = vmatpush.msra.mxu0 %v326
        %359 = vmatpush.msra.mxu0 %v325
        %360 = vmatmul.f32.gmra.mxu0 %v339
        %v361 = vpop.f32.mrf.mxu0
        %v362 = vadd.f32 %v335, %v361
        %363 = vmatmul.f32.gmra.mxu0 %v342
        %v364 = vpop.f32.mrf.mxu0
        %v365 = vadd.f32 %v335, %v364
        %366 = vdwg.mxu0
        %vm367 = vcmask 261120
        %368 = vst.msk [vmem:[%s257] sm:$0xff] %vm367, %v362
        %369 = vst.msk [vmem:[%s257 + $0x8] sm:$0xff] %vm367, %v365
        %s370 = sand.u32 %s159, 1
        %s371 = scalar_lea.sflag [#allocation3], %s370
        %s372 = sand.u32 %s159, 1
        %s373 = smul.addr %s372, 16
        %s374 = scalar_lea.vmem [#allocation2], %s373
        // Predicated region
        $region45: #{tpu_custom_call.1} parent=43 // pred_check
          %p375 = pneg %p169
        $region46: #{tpu_custom_call.1} parent=43 // pred_check_branch
          %377 = sbr.rel (%p375) target = $region48
        $region47: #{tpu_custom_call.1} parent=43 // pred_region
          %s378 = smul.u32 2, %s20
          %s379 = ssub.s32 3, %s378
          %p380 = scmp.lt.s32.totalorder %s379, 2
          %s381 = scalar_select %p380, %s379, 2
          %s382 = smul.u32 8, %s381
          %s383 = ssub.s32 16, %s382
          %s384 = sshll.u32 %s383, 4
          %385 = vsyncadd %s371, %s384
          %p386 = scmp.ne.s32.totalorder 0, %s382
          %s387 = smul.addr %s378, 8
          %s388 = scalar_lea.hbm %s6, %s387
          %s389 = smul.u32 8, %s381
          %s390 = sshll.u32 %s374, 4
          %s391 = int_to_ptr.vmem [resolvable:$true] %s390
          %s392 = sshll.u32 %s388, 4
          %s393 = int_to_ptr.hbm [resolvable:$true] %s392
          %s394 = sshll.u32 %s389, 4
          %398 = dma.vmem_to_hbm [thread:$0]  (%p386), %s391, %s394, %s393, %s371, 128, 128, 8
        $region48: #{tpu_custom_call.1} parent=43 // pred_fallthru
          _
      $region44: #{tpu_custom_call.1} parent=5 // pred_fallthru
        _
      %p399 = scmp.le.s32.totalorder 2, %s15
      // Predicated region
      $region49: #{tpu_custom_call.1} parent=5 // pred_check
        %p400 = pneg %p399
      $region50: #{tpu_custom_call.1} parent=5 // pred_check_branch
        %402 = sbr.rel (%p400) target = $region52
      $region51: #{tpu_custom_call.1} parent=5 // pred_region
        %s403 = ssub.s32 %s15, 2
        // Predicated region
        $region53: #{tpu_custom_call.1} parent=51 // pred_check
          %p404 = pneg %p175
        $region54: #{tpu_custom_call.1} parent=51 // pred_check_branch
          %406 = sbr.rel (%p404) target = $region56
        $region55: #{tpu_custom_call.1} parent=51 // pred_region
          %s407 = sand.u32 %s160, 1
          %s408 = scalar_lea.sflag [#allocation3], %s407
          %s409 = sand.u32 %s160, 1
          %s410 = smul.addr %s409, 16
          %s411 = scalar_lea.vmem [#allocation2], %s410
          %413 = dma.done %s408, 256
        $region56: #{tpu_custom_call.1} parent=51 // pred_fallthru
          _
      $region52: #{tpu_custom_call.1} parent=5 // pred_fallthru
        _
    $region6: #{tpu_custom_call.1} parent=1 // loop_footer
      %s19 = sadd.s32 1, %s15
    $region7: #{tpu_custom_call.1} parent=1 // loop_footer_branch
      %14 = sbr.rel target = $region3
    $region8: #{tpu_custom_call.1} parent=1 // loop_exit
      _
    %414 = vsyncpa [#allocation3], 1
    %s415 = scalar_lea.sflag [#allocation3], 1
    %416 = vsyncpa %s415, 1

</llo_original>
